<compile_context>
chip_gen: v7x
topology: tpu7x:2x2x1
jax: 0.10.0
libtpu: 0.0.40
codegen_flags: <defaults>
</compile_context>

<pallas_src>
import jax
import jax.numpy as jnp
from jax.experimental import pallas as pl
from jax.experimental.pallas import tpu as pltpu

HIDDEN = 128  # lane-padded hidden width used for every layer inside the kernel


def mlp_kernel(x_ref, w1_ref, b1_ref, w2_ref, b2_ref, w3_ref, b3_ref,
               w4_ref, b4_ref, o_ref):
    f32 = jnp.float32
    bf16 = jnp.bfloat16

    # fc1 + ReLU  (bf16 MXU operands, f32 accumulate, f32 elementwise)
    h = jnp.dot(x_ref[...], w1_ref[...], preferred_element_type=f32)
    h = jnp.maximum(h + b1_ref[...], 0.0)

    # fc2 + ReLU
    h = jnp.dot(h.astype(bf16), w2_ref[...], preferred_element_type=f32)
    h = jnp.maximum(h + b2_ref[...], 0.0)

    # fc3 + ReLU
    h = jnp.dot(h.astype(bf16), w3_ref[...], preferred_element_type=f32)
    h = jnp.maximum(h + b3_ref[...], 0.0)

    # fc4 + sigmoid: (1,128) . (TB,128)^T -> (1, TB), lane-major result so the
    # output store is a dense lane-wide slab (no (TB,1) masked column store).
    z = jax.lax.dot_general(
        w4_ref[...], h.astype(bf16),
        dimension_numbers=(((1,), (1,)), ((), ())),
        preferred_element_type=f32)
    o_ref[...] = jax.nn.sigmoid(z + b4_ref[0, 0])


def feed_forward_dnn(x, params, *, tb=256):
    """Fused 4-layer MLP forward. x: (B, input_dim) f32 -> (B, 1) f32.

    tb: rows per grid step. 256 is a good default for v6e/v7x (256-wide MXU);
    128-256 also fine on v5e (128-wide MXU).
    """
    (w1, b1), (w2, b2), (w3, b3), (w4, b4) = params
    B, D = x.shape
    H = HIDDEN
    bf16 = jnp.bfloat16

    # --- zero-pad hidden dims (64, 32, 1) up to 128 lanes (exact) -------------
    def pad_to(a, rows, cols):
        return jnp.pad(a, ((0, rows - a.shape[0]), (0, cols - a.shape[1])))

    w1p = w1.astype(bf16)                          # (D, 128)
    b1p = b1.astype(jnp.float32)                   # (1, 128)
    w2p = pad_to(w2, H, H).astype(bf16)            # (128, 128)
    b2p = pad_to(b2, 1, H).astype(jnp.float32)     # (1, 128)
    w3p = pad_to(w3, H, H).astype(bf16)            # (128, 128)
    b3p = pad_to(b3, 1, H).astype(jnp.float32)     # (1, 128)
    w4p = pad_to(w4, H, 1).T.astype(bf16)          # (1, 128) row vector
    b4p = b4.reshape(1, 1).astype(jnp.float32)     # scalar -> SMEM

    # --- batch tiling: pad B up to a multiple of tb (padded rows sliced off) --
    n_tiles = pl.cdiv(B, tb)
    padded_b = n_tiles * tb
    xp = jnp.pad(x, ((0, padded_b - B), (0, 0))).astype(bf16)

    resident = lambda shape: pl.BlockSpec(shape, lambda i: (0, 0))  # VMEM-resident

    out = pl.pallas_call(
        mlp_kernel,
        out_shape=jax.ShapeDtypeStruct((1, padded_b), jnp.float32),
        grid=(n_tiles,),
        in_specs=[
            pl.BlockSpec((tb, D), lambda i: (i, 0)),            # x: streamed per tile
            resident((D, H)), resident((1, H)),                 # fc1
            resident((H, H)), resident((1, H)),                 # fc2
            resident((H, H)), resident((1, H)),                 # fc3
            resident((1, H)),                                   # fc4 row vector
            pl.BlockSpec(memory_space=pltpu.MemorySpace.SMEM),  # b4 scalar
        ],
        out_specs=pl.BlockSpec((1, tb), lambda i: (0, i)),      # lane-dense output
        compiler_params=pltpu.CompilerParams(
            dimension_semantics=("parallel",),                  # shard tiles over TCs
            vmem_limit_bytes=32 * 1024 * 1024),                 # explicit budget
    )(xp, w1p, b1p, w2p, b2p, w3p, b3p, w4p, b4p)

    return out[0, :B].reshape(B, 1)


def init_params(key, input_dim):
    """Deterministic init mimicking nn.Linear's uniform(-1/sqrt(fan_in), +)."""
    dims = [input_dim, 128, 64, 32, 1]
    params = []
    for i in range(4):
        fan_in, fan_out = dims[i], dims[i + 1]
        key, kw, kb = jax.random.split(key, 3)
        bound = 1.0 / jnp.sqrt(jnp.float32(fan_in))
        # Stored as (in, out) == transpose of PyTorch's (out, in) weight.
        w = jax.random.uniform(kw, (fan_in, fan_out), jnp.float32, -bound, bound)
        b = jax.random.uniform(kb, (1, fan_out), jnp.float32, -bound, bound)
        params.append((w, b))
    return params


def reference_forward(x, params):
    """Pure-JAX reference matching the kernel's bf16-operand / f32-accum math."""
    bf16 = jnp.bfloat16
    h = x.astype(bf16)
    for i, (w, b) in enumerate(params):
        z = jnp.dot(h, w.astype(bf16), preferred_element_type=jnp.float32) + b
        if i < 3:
            h = jnp.maximum(z, 0.0).astype(bf16)
        else:
            return jax.nn.sigmoid(z)


if __name__ == "__main__":
    key = jax.random.PRNGKey(0)
    input_dim = 32   # synthetic feature dim (feature_store is empty in source)
    kx, kp, kx2 = jax.random.split(key, 3)
    params = init_params(kp, input_dim)

    # Small single-tile case (B=8).
    x = jax.random.normal(kx, (8, input_dim), jnp.float32)
    out = jax.block_until_ready(feed_forward_dnn(x, params))
    ref = reference_forward(x, params)
    assert out.shape == (8, 1)
    assert jnp.allclose(out, ref, atol=5e-3), float(jnp.max(jnp.abs(out - ref)))

    # Multi-tile case exercising the batch grid + padding path (B=300, 2 tiles).
    x2 = jax.random.normal(kx2, (300, input_dim), jnp.float32)
    out2 = jax.block_until_ready(feed_forward_dnn(x2, params, tb=256))
    ref2 = reference_forward(x2, params)
    assert out2.shape == (300, 1)
    assert jnp.allclose(out2, ref2, atol=5e-3), float(jnp.max(jnp.abs(out2 - ref2)))

    print("KERNEL_OK")
</pallas_src>

<mosaic_0001>
module attributes {stable_mosaic.version = 11 : i64} {
  func.func @mlp_kernel(%arg0: i32, %arg1: memref<256x32xbf16, #tpu.memory_space<vmem>>, %arg2: memref<32x128xbf16, #tpu.memory_space<vmem>>, %arg3: memref<1x128xf32, #tpu.memory_space<vmem>>, %arg4: memref<128x128xbf16, #tpu.memory_space<vmem>>, %arg5: memref<1x128xf32, #tpu.memory_space<vmem>>, %arg6: memref<128x128xbf16, #tpu.memory_space<vmem>>, %arg7: memref<1x128xf32, #tpu.memory_space<vmem>>, %arg8: memref<1x128xbf16, #tpu.memory_space<vmem>>, %arg9: memref<1x1xf32, #tpu.memory_space<smem>>, %arg10: memref<1x256xf32, #tpu.memory_space<vmem>>) attributes {dimension_semantics = [#tpu.dimension_semantics<parallel>], iteration_bounds = array<i64: 1>, scalar_prefetch = 0 : i64, scratch_operands = 0 : i64, tpu.core_type = #tpu.core_type<tc>, window_params = [{transform_indices = @transform_0, window_bounds = array<i64: 256, 32>}, {pipeline_mode = #tpu.pipeline_mode<synchronous>, transform_indices = @transform_1, window_bounds = array<i64: 32, 128>}, {pipeline_mode = #tpu.pipeline_mode<synchronous>, transform_indices = @transform_2, window_bounds = array<i64: 1, 128>}, {pipeline_mode = #tpu.pipeline_mode<synchronous>, transform_indices = @transform_3, window_bounds = array<i64: 128, 128>}, {pipeline_mode = #tpu.pipeline_mode<synchronous>, transform_indices = @transform_4, window_bounds = array<i64: 1, 128>}, {pipeline_mode = #tpu.pipeline_mode<synchronous>, transform_indices = @transform_5, window_bounds = array<i64: 128, 128>}, {pipeline_mode = #tpu.pipeline_mode<synchronous>, transform_indices = @transform_6, window_bounds = array<i64: 1, 128>}, {pipeline_mode = #tpu.pipeline_mode<synchronous>, transform_indices = @transform_7, window_bounds = array<i64: 1, 128>}, {transform_indices = @transform_8, window_bounds = array<i64: 1, 1>}, {transform_indices = @transform_9, window_bounds = array<i64: 1, 256>}]} {
    %c0 = arith.constant 0 : index
    %c0_0 = arith.constant 0 : index
    %0 = vector.load %arg1[%c0, %c0_0] : memref<256x32xbf16, #tpu.memory_space<vmem>>, vector<256x32xbf16>
    %c0_1 = arith.constant 0 : index
    %c0_2 = arith.constant 0 : index
    %1 = vector.load %arg2[%c0_1, %c0_2] : memref<32x128xbf16, #tpu.memory_space<vmem>>, vector<32x128xbf16>
    %cst = arith.constant dense<0.000000e+00> : vector<256x128xf32>
    %2 = tpu.matmul %0, %1, %cst {dimension_numbers = #tpu.dot_dimension_numbers<[1], [0], [0], [1], [0, 0, 1, 1], [], []>} : vector<256x32xbf16>, vector<32x128xbf16>, vector<256x128xf32> -> vector<256x128xf32>
    %c0_3 = arith.constant 0 : index
    %c0_4 = arith.constant 0 : index
    %3 = vector.load %arg3[%c0_3, %c0_4] : memref<1x128xf32, #tpu.memory_space<vmem>>, vector<1x128xf32>
    %4 = vector.broadcast %3 : vector<1x128xf32> to vector<256x128xf32>
    %5 = arith.addf %2, %4 : vector<256x128xf32>
    %cst_5 = arith.constant 0.000000e+00 : f32
    %6 = vector.broadcast %cst_5 : f32 to vector<256x128xf32>
    %7 = arith.maximumf %5, %6 : vector<256x128xf32>
    %8 = arith.truncf %7 : vector<256x128xf32> to vector<256x128xbf16>
    %c0_6 = arith.constant 0 : index
    %c0_7 = arith.constant 0 : index
    %9 = vector.load %arg4[%c0_6, %c0_7] : memref<128x128xbf16, #tpu.memory_space<vmem>>, vector<128x128xbf16>
    %cst_8 = arith.constant dense<0.000000e+00> : vector<256x128xf32>
    %10 = tpu.matmul %8, %9, %cst_8 {dimension_numbers = #tpu.dot_dimension_numbers<[1], [0], [0], [1], [0, 0, 1, 1], [], []>} : vector<256x128xbf16>, vector<128x128xbf16>, vector<256x128xf32> -> vector<256x128xf32>
    %c0_9 = arith.constant 0 : index
    %c0_10 = arith.constant 0 : index
    %11 = vector.load %arg5[%c0_9, %c0_10] : memref<1x128xf32, #tpu.memory_space<vmem>>, vector<1x128xf32>
    %12 = vector.broadcast %11 : vector<1x128xf32> to vector<256x128xf32>
    %13 = arith.addf %10, %12 : vector<256x128xf32>
    %cst_11 = arith.constant 0.000000e+00 : f32
    %14 = vector.broadcast %cst_11 : f32 to vector<256x128xf32>
    %15 = arith.maximumf %13, %14 : vector<256x128xf32>
    %16 = arith.truncf %15 : vector<256x128xf32> to vector<256x128xbf16>
    %c0_12 = arith.constant 0 : index
    %c0_13 = arith.constant 0 : index
    %17 = vector.load %arg6[%c0_12, %c0_13] : memref<128x128xbf16, #tpu.memory_space<vmem>>, vector<128x128xbf16>
    %cst_14 = arith.constant dense<0.000000e+00> : vector<256x128xf32>
    %18 = tpu.matmul %16, %17, %cst_14 {dimension_numbers = #tpu.dot_dimension_numbers<[1], [0], [0], [1], [0, 0, 1, 1], [], []>} : vector<256x128xbf16>, vector<128x128xbf16>, vector<256x128xf32> -> vector<256x128xf32>
    %c0_15 = arith.constant 0 : index
    %c0_16 = arith.constant 0 : index
    %19 = vector.load %arg7[%c0_15, %c0_16] : memref<1x128xf32, #tpu.memory_space<vmem>>, vector<1x128xf32>
    %20 = vector.broadcast %19 : vector<1x128xf32> to vector<256x128xf32>
    %21 = arith.addf %18, %20 : vector<256x128xf32>
    %cst_17 = arith.constant 0.000000e+00 : f32
    %22 = vector.broadcast %cst_17 : f32 to vector<256x128xf32>
    %23 = arith.maximumf %21, %22 : vector<256x128xf32>
    %c0_18 = arith.constant 0 : index
    %c0_19 = arith.constant 0 : index
    %24 = vector.load %arg8[%c0_18, %c0_19] : memref<1x128xbf16, #tpu.memory_space<vmem>>, vector<1x128xbf16>
    %25 = arith.truncf %23 : vector<256x128xf32> to vector<256x128xbf16>
    %cst_20 = arith.constant dense<0.000000e+00> : vector<1x256xf32>
    %26 = tpu.matmul %24, %25, %cst_20 {dimension_numbers = #tpu.dot_dimension_numbers<[1], [1], [0], [0], [0, 0, 1, 0], [], []>} : vector<1x128xbf16>, vector<256x128xbf16>, vector<1x256xf32> -> vector<1x256xf32>
    %c0_21 = arith.constant 0 : index
    %c0_22 = arith.constant 0 : index
    %27 = memref.load %arg9[%c0_21, %c0_22] : memref<1x1xf32, #tpu.memory_space<smem>>
    %28 = vector.broadcast %27 : f32 to vector<1x256xf32>
    %29 = arith.addf %26, %28 : vector<1x256xf32>
    %30 = arith.negf %29 : vector<1x256xf32>
    %31 = math.exp %30 : vector<1x256xf32>
    %cst_23 = arith.constant 1.000000e+00 : f32
    %32 = vector.broadcast %cst_23 : f32 to vector<1x256xf32>
    %33 = arith.addf %32, %31 : vector<1x256xf32>
    %34 = arith.divf %32, %33 : vector<1x256xf32>
    %c0_24 = arith.constant 0 : index
    %c0_25 = arith.constant 0 : index
    %35 = vector.load %arg10[%c0_24, %c0_25] : memref<1x256xf32, #tpu.memory_space<vmem>>, vector<1x256xf32>
    tpu.vector_store %arg10[%c0_24, %c0_25], %34 {strides = array<i32>} : memref<1x256xf32, #tpu.memory_space<vmem>>, vector<1x256xf32>,
    return
  }
  func.func @transform_0(%arg0: i32) -> (i32, i32) {
    %c0_i32 = arith.constant 0 : i32
    %c0_i32_0 = arith.constant 0 : i32
    return %arg0, %c0_i32 : i32, i32
  }
  func.func @transform_1(%arg0: i32) -> (i32, i32) {
    %c0_i32 = arith.constant 0 : i32
    %c0_i32_0 = arith.constant 0 : i32
    %c0_i32_1 = arith.constant 0 : i32
    return %c0_i32, %c0_i32_0 : i32, i32
  }
  func.func @transform_2(%arg0: i32) -> (i32, i32) {
    %c0_i32 = arith.constant 0 : i32
    %c0_i32_0 = arith.constant 0 : i32
    %c0_i32_1 = arith.constant 0 : i32
    return %c0_i32, %c0_i32_0 : i32, i32
  }
  func.func @transform_3(%arg0: i32) -> (i32, i32) {
    %c0_i32 = arith.constant 0 : i32
    %c0_i32_0 = arith.constant 0 : i32
    %c0_i32_1 = arith.constant 0 : i32
    return %c0_i32, %c0_i32_0 : i32, i32
  }
  func.func @transform_4(%arg0: i32) -> (i32, i32) {
    %c0_i32 = arith.constant 0 : i32
    %c0_i32_0 = arith.constant 0 : i32
    %c0_i32_1 = arith.constant 0 : i32
    return %c0_i32, %c0_i32_0 : i32, i32
  }
  func.func @transform_5(%arg0: i32) -> (i32, i32) {
    %c0_i32 = arith.constant 0 : i32
    %c0_i32_0 = arith.constant 0 : i32
    %c0_i32_1 = arith.constant 0 : i32
    return %c0_i32, %c0_i32_0 : i32, i32
  }
  func.func @transform_6(%arg0: i32) -> (i32, i32) {
    %c0_i32 = arith.constant 0 : i32
    %c0_i32_0 = arith.constant 0 : i32
    %c0_i32_1 = arith.constant 0 : i32
    return %c0_i32, %c0_i32_0 : i32, i32
  }
  func.func @transform_7(%arg0: i32) -> (i32, i32) {
    %c0_i32 = arith.constant 0 : i32
    %c0_i32_0 = arith.constant 0 : i32
    %c0_i32_1 = arith.constant 0 : i32
    return %c0_i32, %c0_i32_0 : i32, i32
  }
  func.func @transform_8(%arg0: i32) -> (i32, i32) {
    %c0_i32 = arith.constant 0 : i32
    %c0_i32_0 = arith.constant 0 : i32
    %c0_i32_1 = arith.constant 0 : i32
    return %c0_i32, %c0_i32_0 : i32, i32
  }
  func.func @transform_9(%arg0: i32) -> (i32, i32) {
    %c0_i32 = arith.constant 0 : i32
    %c0_i32_0 = arith.constant 0 : i32
    return %c0_i32, %arg0 : i32, i32
  }
}

</mosaic_0001>

<llo_original>
// kernel: tpu_custom_call.1
$region0: #{tpu_custom_call.1}
  #allocation0 [shape = 'u32[]', space=smem, size = 0x4, offset = 0x4, fixed_abs, tag = 'smem constant byte address 0x4 - core index']
  #allocation1 [shape = 'u32[144,128]{1,0:T(1,128)}', space=vmem, size = 0x12000, scoped, tag = 'internal scratch']
  #allocation2 [shape = 'f32[1,1]{1,0:T(1,128)S(6)}', space=smem, size = 0x200, scoped, tag = 'scoped memory for tpu_custom_call.1']
  %s0 = inlined_call_operand.vmem [shape: bf16[256,32], index: 0, kind: input, shape index: {}]
  %s1 = inlined_call_operand.vmem [shape: bf16[32,128], index: 1, kind: input, shape index: {}]
  %s2 = inlined_call_operand.vmem [shape: f32[1,128], index: 2, kind: input, shape index: {}]
  %s3 = inlined_call_operand.vmem [shape: bf16[128,128], index: 3, kind: input, shape index: {}]
  %s4 = inlined_call_operand.vmem [shape: f32[1,128], index: 4, kind: input, shape index: {}]
  %s5 = inlined_call_operand.vmem [shape: bf16[128,128], index: 5, kind: input, shape index: {}]
  %s6 = inlined_call_operand.vmem [shape: f32[1,128], index: 6, kind: input, shape index: {}]
  %s7 = inlined_call_operand.vmem [shape: bf16[1,128], index: 7, kind: input, shape index: {}]
  %s8 = inlined_call_operand.<no memory space> [shape: f32[1,1], index: 8, kind: input, shape index: {}]
  %s9 = inlined_call_operand.hbm [shape: f32[1,256], index: 9, kind: output, shape index: {}]
  %s10 = sld [smem:[#allocation0]]
  $region46: #{tpu_custom_call.1} parent=0
    _
  %s12 = ssub.s32 1, %s10
  %s13 = scalar_select 0, %s12, %s10
  %14 = sst [smem:[#allocation2]] %s8
  $region1: #{tpu_custom_call.1} parent=0
    #allocation3 [shape = 'u8[1024]{0}', space=vmem, size = 0x400, scoped, tag = 'output window, operand 0, single buffered']
    #allocation4 [shape = 's32[1]{0}', space=sflag, size = 0x4, scoped, tag = 'scoped memory for tpu_custom_call.1']
    %15 = vsyncpa [#allocation4], 0
    // Predicated region
    $region2: #{tpu_custom_call.1} parent=1 // pred_check
      _
    $region3: #{tpu_custom_call.1} parent=1 // pred_check_branch
      %17 = sbr.rel (0) target = $region5
    $region4: #{tpu_custom_call.1} parent=1 // pred_region
      _
    $region5: #{tpu_custom_call.1} parent=1 // pred_fallthru
      _
    // Predicated region
    $region6: #{tpu_custom_call.1} parent=1 // pred_check
      _
    $region7: #{tpu_custom_call.1} parent=1 // pred_check_branch
      %19 = sbr.rel (0) target = $region9
    $region8: #{tpu_custom_call.1} parent=1 // pred_region
      _
    $region9: #{tpu_custom_call.1} parent=1 // pred_fallthru
      _
    // Predicated region
    $region10: #{tpu_custom_call.1} parent=1 // pred_check
      _
    $region11: #{tpu_custom_call.1} parent=1 // pred_check_branch
      %21 = sbr.rel (0) target = $region13
    $region12: #{tpu_custom_call.1} parent=1 // pred_region
      _
    $region13: #{tpu_custom_call.1} parent=1 // pred_fallthru
      _
    // Predicated region
    $region14: #{tpu_custom_call.1} parent=1 // pred_check
      _
    $region15: #{tpu_custom_call.1} parent=1 // pred_check_branch
      %23 = sbr.rel (0) target = $region17
    $region16: #{tpu_custom_call.1} parent=1 // pred_region
      _
    $region17: #{tpu_custom_call.1} parent=1 // pred_fallthru
      _
    // Predicated region
    $region18: #{tpu_custom_call.1} parent=1 // pred_check
      _
    $region19: #{tpu_custom_call.1} parent=1 // pred_check_branch
      %25 = sbr.rel (0) target = $region21
    $region20: #{tpu_custom_call.1} parent=1 // pred_region
      _
    $region21: #{tpu_custom_call.1} parent=1 // pred_fallthru
      _
    // Predicated region
    $region22: #{tpu_custom_call.1} parent=1 // pred_check
      _
    $region23: #{tpu_custom_call.1} parent=1 // pred_check_branch
      %27 = sbr.rel (0) target = $region25
    $region24: #{tpu_custom_call.1} parent=1 // pred_region
      _
    $region25: #{tpu_custom_call.1} parent=1 // pred_fallthru
      _
    // Predicated region
    $region26: #{tpu_custom_call.1} parent=1 // pred_check
      _
    $region27: #{tpu_custom_call.1} parent=1 // pred_check_branch
      %29 = sbr.rel (0) target = $region29
    $region28: #{tpu_custom_call.1} parent=1 // pred_region
      _
    $region29: #{tpu_custom_call.1} parent=1 // pred_fallthru
      _
    // Predicated region
    $region30: #{tpu_custom_call.1} parent=1 // pred_check
      _
    $region31: #{tpu_custom_call.1} parent=1 // pred_check_branch
      %31 = sbr.rel (0) target = $region33
    $region32: #{tpu_custom_call.1} parent=1 // pred_region
      _
    $region33: #{tpu_custom_call.1} parent=1 // pred_fallthru
      _
    // Predicated region
    $region34: #{tpu_custom_call.1} parent=1 // pred_check
      _
    $region35: #{tpu_custom_call.1} parent=1 // pred_check_branch
      %33 = sbr.rel (0) target = $region37
    $region36: #{tpu_custom_call.1} parent=1 // pred_region
      _
    $region37: #{tpu_custom_call.1} parent=1 // pred_fallthru
      _
    %v35 = vld [vmem:[%s0] sm:$0xf]
    %v36 = vld [vmem:[%s0 + $0x4] sm:$0xf]
    %v37 = vld [vmem:[%s0 + $0x8] sm:$0xf]
    %v38 = vld [vmem:[%s0 + $0xc] sm:$0xf]
    %v39 = vld [vmem:[%s0 + $0x10] sm:$0xf]
    %v40 = vld [vmem:[%s0 + $0x14] sm:$0xf]
    %v41 = vld [vmem:[%s0 + $0x18] sm:$0xf]
    %v42 = vld [vmem:[%s0 + $0x1c] sm:$0xf]
    %v43 = vld [vmem:[%s0 + $0x20] sm:$0xf]
    %v44 = vld [vmem:[%s0 + $0x24] sm:$0xf]
    %v45 = vld [vmem:[%s0 + $0x28] sm:$0xf]
    %v46 = vld [vmem:[%s0 + $0x2c] sm:$0xf]
    %v47 = vld [vmem:[%s0 + $0x30] sm:$0xf]
    %v48 = vld [vmem:[%s0 + $0x34] sm:$0xf]
    %v49 = vld [vmem:[%s0 + $0x38] sm:$0xf]
    %v50 = vld [vmem:[%s0 + $0x3c] sm:$0xf]
    %v51 = vld [vmem:[%s0 + $0x40] sm:$0xf]
    %v52 = vld [vmem:[%s0 + $0x44] sm:$0xf]
    %v53 = vld [vmem:[%s0 + $0x48] sm:$0xf]
    %v54 = vld [vmem:[%s0 + $0x4c] sm:$0xf]
    %v55 = vld [vmem:[%s0 + $0x50] sm:$0xf]
    %v56 = vld [vmem:[%s0 + $0x54] sm:$0xf]
    %v57 = vld [vmem:[%s0 + $0x58] sm:$0xf]
    %v58 = vld [vmem:[%s0 + $0x5c] sm:$0xf]
    %v59 = vld [vmem:[%s0 + $0x60] sm:$0xf]
    %v60 = vld [vmem:[%s0 + $0x64] sm:$0xf]
    %v61 = vld [vmem:[%s0 + $0x68] sm:$0xf]
    %v62 = vld [vmem:[%s0 + $0x6c] sm:$0xf]
    %v63 = vld [vmem:[%s0 + $0x70] sm:$0xf]
    %v64 = vld [vmem:[%s0 + $0x74] sm:$0xf]
    %v65 = vld [vmem:[%s0 + $0x78] sm:$0xf]
    %v66 = vld [vmem:[%s0 + $0x7c] sm:$0xf]
    %v67 = vld [vmem:[%s1] sm:$0xf]
    %v68 = vld [vmem:[%s1 + $0x4] sm:$0xf]
    %v69 = vld [vmem:[%s1 + $0x8] sm:$0xf]
    %v70 = vld [vmem:[%s1 + $0xc] sm:$0xf]
    %v71 = vld [vmem:[%s2] sm:$0x1]
    %v73 = vlaneseq
    %v74 = vshrl.u32 %v73, 7
    %v75 = vsub.s32 0, %v74
    %v76 = vrot.slane %v71, %v75
    %v110 = vunpack.c.l.b16 %v35
    %v111 = vunpack.c.l.b16 %v36
    %v112 = vunpack.c.l.b16 %v37
    %v113 = vunpack.c.l.b16 %v38
    %v114 = vunpack.c.l.b16 %v39
    %v115 = vunpack.c.l.b16 %v40
    %v116 = vunpack.c.l.b16 %v41
    %v117 = vunpack.c.l.b16 %v42
    %v118 = vunpack.c.l.b16 %v43
    %v119 = vunpack.c.l.b16 %v44
    %v120 = vunpack.c.l.b16 %v45
    %v121 = vunpack.c.l.b16 %v46
    %v122 = vunpack.c.l.b16 %v47
    %v123 = vunpack.c.l.b16 %v48
    %v124 = vunpack.c.l.b16 %v49
    %v125 = vunpack.c.l.b16 %v50
    %v126 = vunpack.c.l.b16 %v51
    %v127 = vunpack.c.l.b16 %v52
    %v128 = vunpack.c.l.b16 %v53
    %v129 = vunpack.c.l.b16 %v54
    %v130 = vunpack.c.l.b16 %v55
    %v131 = vunpack.c.l.b16 %v56
    %v132 = vunpack.c.l.b16 %v57
    %v133 = vunpack.c.l.b16 %v58
    %v134 = vunpack.c.l.b16 %v59
    %v135 = vunpack.c.l.b16 %v60
    %v136 = vunpack.c.l.b16 %v61
    %v137 = vunpack.c.l.b16 %v62
    %v138 = vunpack.c.l.b16 %v63
    %v139 = vunpack.c.l.b16 %v64
    %v140 = vunpack.c.l.b16 %v65
    %v141 = vunpack.c.l.b16 %v66
    %v142 = vpack.c.b16 %v111, %v110
    %v143 = vpack.c.b16 %v113, %v112
    %v144 = vpack.c.b16 %v115, %v114
    %v145 = vpack.c.b16 %v117, %v116
    %v146 = vpack.c.b16 %v119, %v118
    %v147 = vpack.c.b16 %v121, %v120
    %v148 = vpack.c.b16 %v123, %v122
    %v149 = vpack.c.b16 %v125, %v124
    %v150 = vpack.c.b16 %v127, %v126
    %v151 = vpack.c.b16 %v129, %v128
    %v152 = vpack.c.b16 %v131, %v130
    %v153 = vpack.c.b16 %v133, %v132
    %v154 = vpack.c.b16 %v135, %v134
    %v155 = vpack.c.b16 %v137, %v136
    %v156 = vpack.c.b16 %v139, %v138
    %v157 = vpack.c.b16 %v141, %v140
    %v162 = vunpack.c.l.b16 %v67
    %v163 = vunpack.c.l.b16 %v68
    %v164 = vunpack.c.l.b16 %v69
    %v165 = vunpack.c.l.b16 %v70
    %v166 = vpack.c.b16 %v163, %v162
    %v167 = vpack.c.b16 %v165, %v164
    %vm170 = vcmask 261120
    %v172 = vsel %vm170, %v142, 0
    %v175 = vsel %vm170, %v143, 0
    %v178 = vsel %vm170, %v144, 0
    %v181 = vsel %vm170, %v145, 0
    %v184 = vsel %vm170, %v146, 0
    %v187 = vsel %vm170, %v147, 0
    %v190 = vsel %vm170, %v148, 0
    %v193 = vsel %vm170, %v149, 0
    %v196 = vsel %vm170, %v150, 0
    %v199 = vsel %vm170, %v151, 0
    %v202 = vsel %vm170, %v152, 0
    %v205 = vsel %vm170, %v153, 0
    %v208 = vsel %vm170, %v154, 0
    %v211 = vsel %vm170, %v155, 0
    %v214 = vsel %vm170, %v156, 0
    %v217 = vsel %vm170, %v157, 0
    %219 = vmatprep.subr.bf16.mxu0 0
    %220 = vmatpush1.bf16.msra.mxu0 %v166
    %221 = vmatprep.subr.bf16.mxu0 0
    %222 = vmatpush1.bf16.msra.mxu0 %v167
    %223 = vmatprep.subr.bf16.mxu0 0
    %224 = vmatpush1.bf16.msra.mxu0 0
    %225 = vmatprep.subr.bf16.mxu0 0
    %226 = vmatpush1.bf16.msra.mxu0 0
    %227 = vmatprep.subr.bf16.mxu0 0
    %228 = vmatpush1.bf16.msra.mxu0 0
    %229 = vmatprep.subr.bf16.mxu0 0
    %230 = vmatpush1.bf16.msra.mxu0 0
    %231 = vmatprep.subr.bf16.mxu0 0
    %232 = vmatpush1.bf16.msra.mxu0 0
    %233 = vmatprep.subr.bf16.mxu0 0
    %234 = vmatpush1.bf16.msra.mxu0 0
    %235 = vmatprep.subr.bf16.mxu0 0
    %236 = vmatpush1.bf16.msra.mxu0 0
    %237 = vmatprep.subr.bf16.mxu0 0
    %238 = vmatpush1.bf16.msra.mxu0 0
    %239 = vmatprep.subr.bf16.mxu0 0
    %240 = vmatpush1.bf16.msra.mxu0 0
    %241 = vmatprep.subr.bf16.mxu0 0
    %242 = vmatpush1.bf16.msra.mxu0 0
    %243 = vmatprep.subr.bf16.mxu0 0
    %244 = vmatpush1.bf16.msra.mxu0 0
    %245 = vmatprep.subr.bf16.mxu0 0
    %246 = vmatpush1.bf16.msra.mxu0 0
    %247 = vmatprep.subr.bf16.mxu0 0
    %248 = vmatpush1.bf16.msra.mxu0 0
    %249 = vmatprep.subr.bf16.mxu0 0
    %250 = vmatpush1.bf16.msra.mxu0 0
    %251 = vmatprep.mubr.bf16.mxu0 0
    %252 = vmatmul.mubr.bf16.gmra.mrb[0].mxu0 %v172
    %v253 = vpop.f32.mrb[0].mxu0
    %v254 = vadd.f32 %v76, %v253
    %v255 = vpop.f32.mrb[0].mxu0
    %v256 = vpop.f32.mrb[0].mxu0
    %v257 = vadd.f32 %v76, %v256
    %v258 = vpop.f32.mrb[0].mxu0
    %259 = vmatprep.mubr.bf16.mxu0 0
    %260 = vmatmul.mubr.bf16.gmra.mrb[0].mxu0 %v175
    %v261 = vpop.f32.mrb[0].mxu0
    %v262 = vadd.f32 %v76, %v261
    %v263 = vpop.f32.mrb[0].mxu0
    %v264 = vpop.f32.mrb[0].mxu0
    %v265 = vadd.f32 %v76, %v264
    %v266 = vpop.f32.mrb[0].mxu0
    %267 = vmatprep.mubr.bf16.mxu0 0
    %268 = vmatmul.mubr.bf16.gmra.mrb[0].mxu0 %v178
    %v269 = vpop.f32.mrb[0].mxu0
    %v270 = vadd.f32 %v76, %v269
    %v271 = vpop.f32.mrb[0].mxu0
    %v272 = vpop.f32.mrb[0].mxu0
    %v273 = vadd.f32 %v76, %v272
    %v274 = vpop.f32.mrb[0].mxu0
    %275 = vmatprep.mubr.bf16.mxu0 0
    %276 = vmatmul.mubr.bf16.gmra.mrb[0].mxu0 %v181
    %v277 = vpop.f32.mrb[0].mxu0
    %v278 = vadd.f32 %v76, %v277
    %v279 = vpop.f32.mrb[0].mxu0
    %v280 = vpop.f32.mrb[0].mxu0
    %v281 = vadd.f32 %v76, %v280
    %v282 = vpop.f32.mrb[0].mxu0
    %283 = vmatprep.mubr.bf16.mxu0 0
    %284 = vmatmul.mubr.bf16.gmra.mrb[0].mxu0 %v184
    %v285 = vpop.f32.mrb[0].mxu0
    %v286 = vadd.f32 %v76, %v285
    %v287 = vpop.f32.mrb[0].mxu0
    %v288 = vpop.f32.mrb[0].mxu0
    %v289 = vadd.f32 %v76, %v288
    %v290 = vpop.f32.mrb[0].mxu0
    %291 = vmatprep.mubr.bf16.mxu0 0
    %292 = vmatmul.mubr.bf16.gmra.mrb[0].mxu0 %v187
    %v293 = vpop.f32.mrb[0].mxu0
    %v294 = vadd.f32 %v76, %v293
    %v295 = vpop.f32.mrb[0].mxu0
    %v296 = vpop.f32.mrb[0].mxu0
    %v297 = vadd.f32 %v76, %v296
    %v298 = vpop.f32.mrb[0].mxu0
    %299 = vmatprep.mubr.bf16.mxu0 0
    %300 = vmatmul.mubr.bf16.gmra.mrb[0].mxu0 %v190
    %v301 = vpop.f32.mrb[0].mxu0
    %v302 = vadd.f32 %v76, %v301
    %v303 = vpop.f32.mrb[0].mxu0
    %v304 = vpop.f32.mrb[0].mxu0
    %v305 = vadd.f32 %v76, %v304
    %v306 = vpop.f32.mrb[0].mxu0
    %307 = vmatprep.mubr.bf16.mxu0 0
    %308 = vmatmul.mubr.bf16.gmra.mrb[0].mxu0 %v193
    %v309 = vpop.f32.mrb[0].mxu0
    %v310 = vadd.f32 %v76, %v309
    %v311 = vpop.f32.mrb[0].mxu0
    %v312 = vpop.f32.mrb[0].mxu0
    %v313 = vadd.f32 %v76, %v312
    %v314 = vpop.f32.mrb[0].mxu0
    %315 = vmatprep.mubr.bf16.mxu0 0
    %316 = vmatmul.mubr.bf16.gmra.mrb[0].mxu0 %v196
    %v317 = vpop.f32.mrb[0].mxu0
    %v318 = vadd.f32 %v76, %v317
    %v319 = vpop.f32.mrb[0].mxu0
    %v320 = vpop.f32.mrb[0].mxu0
    %v321 = vadd.f32 %v76, %v320
    %v322 = vpop.f32.mrb[0].mxu0
    %323 = vmatprep.mubr.bf16.mxu0 0
    %324 = vmatmul.mubr.bf16.gmra.mrb[0].mxu0 %v199
    %v325 = vpop.f32.mrb[0].mxu0
    %v326 = vadd.f32 %v76, %v325
    %v327 = vpop.f32.mrb[0].mxu0
    %v328 = vpop.f32.mrb[0].mxu0
    %v329 = vadd.f32 %v76, %v328
    %v330 = vpop.f32.mrb[0].mxu0
    %331 = vmatprep.mubr.bf16.mxu0 0
    %332 = vmatmul.mubr.bf16.gmra.mrb[0].mxu0 %v202
    %v333 = vpop.f32.mrb[0].mxu0
    %v334 = vadd.f32 %v76, %v333
    %v335 = vpop.f32.mrb[0].mxu0
    %v336 = vpop.f32.mrb[0].mxu0
    %v337 = vadd.f32 %v76, %v336
    %v338 = vpop.f32.mrb[0].mxu0
    %339 = vmatprep.mubr.bf16.mxu0 0
    %340 = vmatmul.mubr.bf16.gmra.mrb[0].mxu0 %v205
    %v341 = vpop.f32.mrb[0].mxu0
    %v342 = vadd.f32 %v76, %v341
    %v343 = vpop.f32.mrb[0].mxu0
    %v344 = vpop.f32.mrb[0].mxu0
    %v345 = vadd.f32 %v76, %v344
    %v346 = vpop.f32.mrb[0].mxu0
    %347 = vmatprep.mubr.bf16.mxu0 0
    %348 = vmatmul.mubr.bf16.gmra.mrb[0].mxu0 %v208
    %v349 = vpop.f32.mrb[0].mxu0
    %v350 = vadd.f32 %v76, %v349
    %v351 = vpop.f32.mrb[0].mxu0
    %v352 = vpop.f32.mrb[0].mxu0
    %v353 = vadd.f32 %v76, %v352
    %v354 = vpop.f32.mrb[0].mxu0
    %355 = vmatprep.mubr.bf16.mxu0 0
    %356 = vmatmul.mubr.bf16.gmra.mrb[0].mxu0 %v211
    %v357 = vpop.f32.mrb[0].mxu0
    %v358 = vadd.f32 %v76, %v357
    %v359 = vpop.f32.mrb[0].mxu0
    %v360 = vpop.f32.mrb[0].mxu0
    %v361 = vadd.f32 %v76, %v360
    %v362 = vpop.f32.mrb[0].mxu0
    %363 = vmatprep.mubr.bf16.mxu0 0
    %364 = vmatmul.mubr.bf16.gmra.mrb[0].mxu0 %v214
    %v365 = vpop.f32.mrb[0].mxu0
    %v366 = vadd.f32 %v76, %v365
    %v367 = vpop.f32.mrb[0].mxu0
    %v368 = vpop.f32.mrb[0].mxu0
    %v369 = vadd.f32 %v76, %v368
    %v370 = vpop.f32.mrb[0].mxu0
    %371 = vmatprep.mubr.bf16.mxu0 0
    %372 = vmatmul.mubr.bf16.gmra.mrb[0].mxu0 %v217
    %v373 = vpop.f32.mrb[0].mxu0
    %v374 = vadd.f32 %v76, %v373
    %v375 = vpop.f32.mrb[0].mxu0
    %v376 = vpop.f32.mrb[0].mxu0
    %v377 = vadd.f32 %v76, %v376
    %v378 = vpop.f32.mrb[0].mxu0
    %379 = vdwg.mxu0
    %v380 = vmax.f32 %v254, 0.0
    %v381 = vmax.f32 %v257, 0.0
    %v382 = vmax.f32 %v262, 0.0
    %v383 = vmax.f32 %v265, 0.0
    %v384 = vmax.f32 %v270, 0.0
    %v385 = vmax.f32 %v273, 0.0
    %v386 = vmax.f32 %v278, 0.0
    %v387 = vmax.f32 %v281, 0.0
    %v388 = vmax.f32 %v286, 0.0
    %v389 = vmax.f32 %v289, 0.0
    %v390 = vmax.f32 %v294, 0.0
    %v391 = vmax.f32 %v297, 0.0
    %v392 = vmax.f32 %v302, 0.0
    %v393 = vmax.f32 %v305, 0.0
    %v394 = vmax.f32 %v310, 0.0
    %v395 = vmax.f32 %v313, 0.0
    %v396 = vmax.f32 %v318, 0.0
    %v397 = vmax.f32 %v321, 0.0
    %v398 = vmax.f32 %v326, 0.0
    %v399 = vmax.f32 %v329, 0.0
    %v400 = vmax.f32 %v334, 0.0
    %v401 = vmax.f32 %v337, 0.0
    %v402 = vmax.f32 %v342, 0.0
    %v403 = vmax.f32 %v345, 0.0
    %v404 = vmax.f32 %v350, 0.0
    %v405 = vmax.f32 %v353, 0.0
    %v406 = vmax.f32 %v358, 0.0
    %v407 = vmax.f32 %v361, 0.0
    %v408 = vmax.f32 %v366, 0.0
    %v409 = vmax.f32 %v369, 0.0
    %v410 = vmax.f32 %v374, 0.0
    %v411 = vmax.f32 %v377, 0.0
    %v412 = vpack.c.bf16 %v381, %v380
    %v413 = vpack.c.bf16 %v383, %v382
    %v414 = vpack.c.bf16 %v385, %v384
    %v415 = vpack.c.bf16 %v387, %v386
    %v416 = vpack.c.bf16 %v389, %v388
    %v417 = vpack.c.bf16 %v391, %v390
    %v418 = vpack.c.bf16 %v393, %v392
    %v419 = vpack.c.bf16 %v395, %v394
    %v420 = vpack.c.bf16 %v397, %v396
    %v421 = vpack.c.bf16 %v399, %v398
    %v422 = vpack.c.bf16 %v401, %v400
    %v423 = vpack.c.bf16 %v403, %v402
    %v424 = vpack.c.bf16 %v405, %v404
    %v425 = vpack.c.bf16 %v407, %v406
    %v426 = vpack.c.bf16 %v409, %v408
    %v427 = vpack.c.bf16 %v411, %v410
    %v428 = vld [vmem:[%s3] sm:$0xf]
    %v429 = vld [vmem:[%s3 + $0x4] sm:$0xf]
    %v430 = vld [vmem:[%s3 + $0x8] sm:$0xf]
    %v431 = vld [vmem:[%s3 + $0xc] sm:$0xf]
    %v432 = vld [vmem:[%s3 + $0x10] sm:$0xf]
    %v433 = vld [vmem:[%s3 + $0x14] sm:$0xf]
    %v434 = vld [vmem:[%s3 + $0x18] sm:$0xf]
    %v435 = vld [vmem:[%s3 + $0x1c] sm:$0xf]
    %v436 = vld [vmem:[%s3 + $0x20] sm:$0xf]
    %v437 = vld [vmem:[%s3 + $0x24] sm:$0xf]
    %v438 = vld [vmem:[%s3 + $0x28] sm:$0xf]
    %v439 = vld [vmem:[%s3 + $0x2c] sm:$0xf]
    %v440 = vld [vmem:[%s3 + $0x30] sm:$0xf]
    %v441 = vld [vmem:[%s3 + $0x34] sm:$0xf]
    %v442 = vld [vmem:[%s3 + $0x38] sm:$0xf]
    %v443 = vld [vmem:[%s3 + $0x3c] sm:$0xf]
    %v444 = vld [vmem:[%s4] sm:$0x1]
    %v446 = vlaneseq
    %v447 = vshrl.u32 %v446, 7
    %v448 = vsub.s32 0, %v447
    %v449 = vrot.slane %v444, %v448
    %v467 = vunpack.c.l.b16 %v428
    %v468 = vunpack.c.l.b16 %v429
    %v469 = vunpack.c.l.b16 %v430
    %v470 = vunpack.c.l.b16 %v431
    %v471 = vunpack.c.l.b16 %v432
    %v472 = vunpack.c.l.b16 %v433
    %v473 = vunpack.c.l.b16 %v434
    %v474 = vunpack.c.l.b16 %v435
    %v475 = vunpack.c.l.b16 %v436
    %v476 = vunpack.c.l.b16 %v437
    %v477 = vunpack.c.l.b16 %v438
    %v478 = vunpack.c.l.b16 %v439
    %v479 = vunpack.c.l.b16 %v440
    %v480 = vunpack.c.l.b16 %v441
    %v481 = vunpack.c.l.b16 %v442
    %v482 = vunpack.c.l.b16 %v443
    %v483 = vpack.c.b16 %v468, %v467
    %v484 = vpack.c.b16 %v470, %v469
    %v485 = vpack.c.b16 %v472, %v471
    %v486 = vpack.c.b16 %v474, %v473
    %v487 = vpack.c.b16 %v476, %v475
    %v488 = vpack.c.b16 %v478, %v477
    %v489 = vpack.c.b16 %v480, %v479
    %v490 = vpack.c.b16 %v482, %v481
    %499 = vmatprep.subr.bf16.mxu0 0
    %500 = vmatpush1.bf16.msra.mxu0 %v483
    %501 = vmatprep.subr.bf16.mxu0 0
    %502 = vmatpush1.bf16.msra.mxu0 %v484
    %503 = vmatprep.subr.bf16.mxu0 0
    %504 = vmatpush1.bf16.msra.mxu0 %v485
    %505 = vmatprep.subr.bf16.mxu0 0
    %506 = vmatpush1.bf16.msra.mxu0 %v486
    %507 = vmatprep.subr.bf16.mxu0 0
    %508 = vmatpush1.bf16.msra.mxu0 %v487
    %509 = vmatprep.subr.bf16.mxu0 0
    %510 = vmatpush1.bf16.msra.mxu0 %v488
    %511 = vmatprep.subr.bf16.mxu0 0
    %512 = vmatpush1.bf16.msra.mxu0 %v489
    %513 = vmatprep.subr.bf16.mxu0 0
    %514 = vmatpush1.bf16.msra.mxu0 %v490
    %515 = vmatprep.subr.bf16.mxu0 0
    %516 = vmatpush1.bf16.msra.mxu0 0
    %517 = vmatprep.subr.bf16.mxu0 0
    %518 = vmatpush1.bf16.msra.mxu0 0
    %519 = vmatprep.subr.bf16.mxu0 0
    %520 = vmatpush1.bf16.msra.mxu0 0
    %521 = vmatprep.subr.bf16.mxu0 0
    %522 = vmatpush1.bf16.msra.mxu0 0
    %523 = vmatprep.subr.bf16.mxu0 0
    %524 = vmatpush1.bf16.msra.mxu0 0
    %525 = vmatprep.subr.bf16.mxu0 0
    %526 = vmatpush1.bf16.msra.mxu0 0
    %527 = vmatprep.subr.bf16.mxu0 0
    %528 = vmatpush1.bf16.msra.mxu0 0
    %529 = vmatprep.subr.bf16.mxu0 0
    %530 = vmatpush1.bf16.msra.mxu0 0
    %531 = vmatprep.mubr.bf16.mxu0 0
    %532 = vmatmul.mubr.bf16.gmra.mrb[0].mxu0 %v412
    %v533 = vpop.f32.mrb[0].mxu0
    %v534 = vadd.f32 %v449, %v533
    %v535 = vpop.f32.mrb[0].mxu0
    %v536 = vpop.f32.mrb[0].mxu0
    %v537 = vadd.f32 %v449, %v536
    %v538 = vpop.f32.mrb[0].mxu0
    %539 = vmatprep.mubr.bf16.mxu0 0
    %540 = vmatmul.mubr.bf16.gmra.mrb[0].mxu0 %v413
    %v541 = vpop.f32.mrb[0].mxu0
    %v542 = vadd.f32 %v449, %v541
    %v543 = vpop.f32.mrb[0].mxu0
    %v544 = vpop.f32.mrb[0].mxu0
    %v545 = vadd.f32 %v449, %v544
    %v546 = vpop.f32.mrb[0].mxu0
    %547 = vmatprep.mubr.bf16.mxu0 0
    %548 = vmatmul.mubr.bf16.gmra.mrb[0].mxu0 %v414
    %v549 = vpop.f32.mrb[0].mxu0
    %v550 = vadd.f32 %v449, %v549
    %v551 = vpop.f32.mrb[0].mxu0
    %v552 = vpop.f32.mrb[0].mxu0
    %v553 = vadd.f32 %v449, %v552
    %v554 = vpop.f32.mrb[0].mxu0
    %555 = vmatprep.mubr.bf16.mxu0 0
    %556 = vmatmul.mubr.bf16.gmra.mrb[0].mxu0 %v415
    %v557 = vpop.f32.mrb[0].mxu0
    %v558 = vadd.f32 %v449, %v557
    %v559 = vpop.f32.mrb[0].mxu0
    %v560 = vpop.f32.mrb[0].mxu0
    %v561 = vadd.f32 %v449, %v560
    %v562 = vpop.f32.mrb[0].mxu0
    %563 = vmatprep.mubr.bf16.mxu0 0
    %564 = vmatmul.mubr.bf16.gmra.mrb[0].mxu0 %v416
    %v565 = vpop.f32.mrb[0].mxu0
    %v566 = vadd.f32 %v449, %v565
    %v567 = vpop.f32.mrb[0].mxu0
    %v568 = vpop.f32.mrb[0].mxu0
    %v569 = vadd.f32 %v449, %v568
    %v570 = vpop.f32.mrb[0].mxu0
    %571 = vmatprep.mubr.bf16.mxu0 0
    %572 = vmatmul.mubr.bf16.gmra.mrb[0].mxu0 %v417
    %v573 = vpop.f32.mrb[0].mxu0
    %v574 = vadd.f32 %v449, %v573
    %v575 = vpop.f32.mrb[0].mxu0
    %v576 = vpop.f32.mrb[0].mxu0
    %v577 = vadd.f32 %v449, %v576
    %v578 = vpop.f32.mrb[0].mxu0
    %579 = vmatprep.mubr.bf16.mxu0 0
    %580 = vmatmul.mubr.bf16.gmra.mrb[0].mxu0 %v418
    %v581 = vpop.f32.mrb[0].mxu0
    %v582 = vadd.f32 %v449, %v581
    %v583 = vpop.f32.mrb[0].mxu0
    %v584 = vpop.f32.mrb[0].mxu0
    %v585 = vadd.f32 %v449, %v584
    %v586 = vpop.f32.mrb[0].mxu0
    %587 = vmatprep.mubr.bf16.mxu0 0
    %588 = vmatmul.mubr.bf16.gmra.mrb[0].mxu0 %v419
    %v589 = vpop.f32.mrb[0].mxu0
    %v590 = vadd.f32 %v449, %v589
    %v591 = vpop.f32.mrb[0].mxu0
    %v592 = vpop.f32.mrb[0].mxu0
    %v593 = vadd.f32 %v449, %v592
    %v594 = vpop.f32.mrb[0].mxu0
    %595 = vmatprep.mubr.bf16.mxu0 0
    %596 = vmatmul.mubr.bf16.gmra.mrb[0].mxu0 %v420
    %v597 = vpop.f32.mrb[0].mxu0
    %v598 = vadd.f32 %v449, %v597
    %v599 = vpop.f32.mrb[0].mxu0
    %v600 = vpop.f32.mrb[0].mxu0
    %v601 = vadd.f32 %v449, %v600
    %v602 = vpop.f32.mrb[0].mxu0
    %603 = vmatprep.mubr.bf16.mxu0 0
    %604 = vmatmul.mubr.bf16.gmra.mrb[0].mxu0 %v421
    %v605 = vpop.f32.mrb[0].mxu0
    %v606 = vadd.f32 %v449, %v605
    %v607 = vpop.f32.mrb[0].mxu0
    %v608 = vpop.f32.mrb[0].mxu0
    %v609 = vadd.f32 %v449, %v608
    %v610 = vpop.f32.mrb[0].mxu0
    %611 = vmatprep.mubr.bf16.mxu0 0
    %612 = vmatmul.mubr.bf16.gmra.mrb[0].mxu0 %v422
    %v613 = vpop.f32.mrb[0].mxu0
    %v614 = vadd.f32 %v449, %v613
    %v615 = vpop.f32.mrb[0].mxu0
    %v616 = vpop.f32.mrb[0].mxu0
    %v617 = vadd.f32 %v449, %v616
    %v618 = vpop.f32.mrb[0].mxu0
    %619 = vmatprep.mubr.bf16.mxu0 0
    %620 = vmatmul.mubr.bf16.gmra.mrb[0].mxu0 %v423
    %v621 = vpop.f32.mrb[0].mxu0
    %v622 = vadd.f32 %v449, %v621
    %v623 = vpop.f32.mrb[0].mxu0
    %v624 = vpop.f32.mrb[0].mxu0
    %v625 = vadd.f32 %v449, %v624
    %v626 = vpop.f32.mrb[0].mxu0
    %627 = vmatprep.mubr.bf16.mxu0 0
    %628 = vmatmul.mubr.bf16.gmra.mrb[0].mxu0 %v424
    %v629 = vpop.f32.mrb[0].mxu0
    %v630 = vadd.f32 %v449, %v629
    %v631 = vpop.f32.mrb[0].mxu0
    %v632 = vpop.f32.mrb[0].mxu0
    %v633 = vadd.f32 %v449, %v632
    %v634 = vpop.f32.mrb[0].mxu0
    %635 = vmatprep.mubr.bf16.mxu0 0
    %636 = vmatmul.mubr.bf16.gmra.mrb[0].mxu0 %v425
    %v637 = vpop.f32.mrb[0].mxu0
    %v638 = vadd.f32 %v449, %v637
    %v639 = vpop.f32.mrb[0].mxu0
    %v640 = vpop.f32.mrb[0].mxu0
    %v641 = vadd.f32 %v449, %v640
    %v642 = vpop.f32.mrb[0].mxu0
    %643 = vmatprep.mubr.bf16.mxu0 0
    %644 = vmatmul.mubr.bf16.gmra.mrb[0].mxu0 %v426
    %v645 = vpop.f32.mrb[0].mxu0
    %v646 = vadd.f32 %v449, %v645
    %v647 = vpop.f32.mrb[0].mxu0
    %v648 = vpop.f32.mrb[0].mxu0
    %v649 = vadd.f32 %v449, %v648
    %v650 = vpop.f32.mrb[0].mxu0
    %651 = vmatprep.mubr.bf16.mxu0 0
    %652 = vmatmul.mubr.bf16.gmra.mrb[0].mxu0 %v427
    %v653 = vpop.f32.mrb[0].mxu0
    %v654 = vadd.f32 %v449, %v653
    %v655 = vpop.f32.mrb[0].mxu0
    %v656 = vpop.f32.mrb[0].mxu0
    %v657 = vadd.f32 %v449, %v656
    %v658 = vpop.f32.mrb[0].mxu0
    %659 = vdwg.mxu0
    %v660 = vmax.f32 %v534, 0.0
    %v661 = vmax.f32 %v537, 0.0
    %v662 = vmax.f32 %v542, 0.0
    %v663 = vmax.f32 %v545, 0.0
    %v664 = vmax.f32 %v550, 0.0
    %v665 = vmax.f32 %v553, 0.0
    %v666 = vmax.f32 %v558, 0.0
    %v667 = vmax.f32 %v561, 0.0
    %v668 = vmax.f32 %v566, 0.0
    %v669 = vmax.f32 %v569, 0.0
    %v670 = vmax.f32 %v574, 0.0
    %v671 = vmax.f32 %v577, 0.0
    %v672 = vmax.f32 %v582, 0.0
    %v673 = vmax.f32 %v585, 0.0
    %v674 = vmax.f32 %v590, 0.0
    %v675 = vmax.f32 %v593, 0.0
    %v676 = vmax.f32 %v598, 0.0
    %v677 = vmax.f32 %v601, 0.0
    %v678 = vmax.f32 %v606, 0.0
    %v679 = vmax.f32 %v609, 0.0
    %v680 = vmax.f32 %v614, 0.0
    %v681 = vmax.f32 %v617, 0.0
    %v682 = vmax.f32 %v622, 0.0
    %v683 = vmax.f32 %v625, 0.0
    %v684 = vmax.f32 %v630, 0.0
    %v685 = vmax.f32 %v633, 0.0
    %v686 = vmax.f32 %v638, 0.0
    %v687 = vmax.f32 %v641, 0.0
    %v688 = vmax.f32 %v646, 0.0
    %v689 = vmax.f32 %v649, 0.0
    %v690 = vmax.f32 %v654, 0.0
    %v691 = vmax.f32 %v657, 0.0
    %v692 = vpack.c.bf16 %v661, %v660
    %v693 = vpack.c.bf16 %v663, %v662
    %v694 = vpack.c.bf16 %v665, %v664
    %v695 = vpack.c.bf16 %v667, %v666
    %v696 = vpack.c.bf16 %v669, %v668
    %v697 = vpack.c.bf16 %v671, %v670
    %v698 = vpack.c.bf16 %v673, %v672
    %v699 = vpack.c.bf16 %v675, %v674
    %v700 = vpack.c.bf16 %v677, %v676
    %v701 = vpack.c.bf16 %v679, %v678
    %v702 = vpack.c.bf16 %v681, %v680
    %v703 = vpack.c.bf16 %v683, %v682
    %v704 = vpack.c.bf16 %v685, %v684
    %v705 = vpack.c.bf16 %v687, %v686
    %v706 = vpack.c.bf16 %v689, %v688
    %v707 = vpack.c.bf16 %v691, %v690
    %v708 = vld [vmem:[%s5] sm:$0xf]
    %v709 = vld [vmem:[%s5 + $0x4] sm:$0xf]
    %v710 = vld [vmem:[%s5 + $0x8] sm:$0xf]
    %v711 = vld [vmem:[%s5 + $0xc] sm:$0xf]
    %v712 = vld [vmem:[%s5 + $0x10] sm:$0xf]
    %v713 = vld [vmem:[%s5 + $0x14] sm:$0xf]
    %v714 = vld [vmem:[%s5 + $0x18] sm:$0xf]
    %v715 = vld [vmem:[%s5 + $0x1c] sm:$0xf]
    %v716 = vld [vmem:[%s5 + $0x20] sm:$0xf]
    %v717 = vld [vmem:[%s5 + $0x24] sm:$0xf]
    %v718 = vld [vmem:[%s5 + $0x28] sm:$0xf]
    %v719 = vld [vmem:[%s5 + $0x2c] sm:$0xf]
    %v720 = vld [vmem:[%s5 + $0x30] sm:$0xf]
    %v721 = vld [vmem:[%s5 + $0x34] sm:$0xf]
    %v722 = vld [vmem:[%s5 + $0x38] sm:$0xf]
    %v723 = vld [vmem:[%s5 + $0x3c] sm:$0xf]
    %v724 = vld [vmem:[%s6] sm:$0x1]
    %v726 = vlaneseq
    %v727 = vshrl.u32 %v726, 7
    %v728 = vsub.s32 0, %v727
    %v729 = vrot.slane %v724, %v728
    %v747 = vunpack.c.l.b16 %v708
    %v748 = vunpack.c.l.b16 %v709
    %v749 = vunpack.c.l.b16 %v710
    %v750 = vunpack.c.l.b16 %v711
    %v751 = vunpack.c.l.b16 %v712
    %v752 = vunpack.c.l.b16 %v713
    %v753 = vunpack.c.l.b16 %v714
    %v754 = vunpack.c.l.b16 %v715
    %v755 = vunpack.c.l.b16 %v716
    %v756 = vunpack.c.l.b16 %v717
    %v757 = vunpack.c.l.b16 %v718
    %v758 = vunpack.c.l.b16 %v719
    %v759 = vunpack.c.l.b16 %v720
    %v760 = vunpack.c.l.b16 %v721
    %v761 = vunpack.c.l.b16 %v722
    %v762 = vunpack.c.l.b16 %v723
    %v763 = vpack.c.b16 %v748, %v747
    %v764 = vpack.c.b16 %v750, %v749
    %v765 = vpack.c.b16 %v752, %v751
    %v766 = vpack.c.b16 %v754, %v753
    %v767 = vpack.c.b16 %v756, %v755
    %v768 = vpack.c.b16 %v758, %v757
    %v769 = vpack.c.b16 %v760, %v759
    %v770 = vpack.c.b16 %v762, %v761
    %779 = vmatprep.subr.bf16.mxu0 0
    %780 = vmatpush1.bf16.msra.mxu0 %v763
    %781 = vmatprep.subr.bf16.mxu0 0
    %782 = vmatpush1.bf16.msra.mxu0 %v764
    %783 = vmatprep.subr.bf16.mxu0 0
    %784 = vmatpush1.bf16.msra.mxu0 %v765
    %785 = vmatprep.subr.bf16.mxu0 0
    %786 = vmatpush1.bf16.msra.mxu0 %v766
    %787 = vmatprep.subr.bf16.mxu0 0
    %788 = vmatpush1.bf16.msra.mxu0 %v767
    %789 = vmatprep.subr.bf16.mxu0 0
    %790 = vmatpush1.bf16.msra.mxu0 %v768
    %791 = vmatprep.subr.bf16.mxu0 0
    %792 = vmatpush1.bf16.msra.mxu0 %v769
    %793 = vmatprep.subr.bf16.mxu0 0
    %794 = vmatpush1.bf16.msra.mxu0 %v770
    %795 = vmatprep.subr.bf16.mxu0 0
    %796 = vmatpush1.bf16.msra.mxu0 0
    %797 = vmatprep.subr.bf16.mxu0 0
    %798 = vmatpush1.bf16.msra.mxu0 0
    %799 = vmatprep.subr.bf16.mxu0 0
    %800 = vmatpush1.bf16.msra.mxu0 0
    %801 = vmatprep.subr.bf16.mxu0 0
    %802 = vmatpush1.bf16.msra.mxu0 0
    %803 = vmatprep.subr.bf16.mxu0 0
    %804 = vmatpush1.bf16.msra.mxu0 0
    %805 = vmatprep.subr.bf16.mxu0 0
    %806 = vmatpush1.bf16.msra.mxu0 0
    %807 = vmatprep.subr.bf16.mxu0 0
    %808 = vmatpush1.bf16.msra.mxu0 0
    %809 = vmatprep.subr.bf16.mxu0 0
    %810 = vmatpush1.bf16.msra.mxu0 0
    %811 = vmatprep.mubr.bf16.mxu0 0
    %812 = vmatmul.mubr.bf16.gmra.mrb[0].mxu0 %v692
    %v813 = vpop.f32.mrb[0].mxu0
    %v814 = vadd.f32 %v729, %v813
    %v815 = vpop.f32.mrb[0].mxu0
    %v816 = vpop.f32.mrb[0].mxu0
    %v817 = vadd.f32 %v729, %v816
    %v818 = vpop.f32.mrb[0].mxu0
    %819 = vmatprep.mubr.bf16.mxu0 0
    %820 = vmatmul.mubr.bf16.gmra.mrb[0].mxu0 %v693
    %v821 = vpop.f32.mrb[0].mxu0
    %v822 = vadd.f32 %v729, %v821
    %v823 = vpop.f32.mrb[0].mxu0
    %v824 = vpop.f32.mrb[0].mxu0
    %v825 = vadd.f32 %v729, %v824
    %v826 = vpop.f32.mrb[0].mxu0
    %827 = vmatprep.mubr.bf16.mxu0 0
    %828 = vmatmul.mubr.bf16.gmra.mrb[0].mxu0 %v694
    %v829 = vpop.f32.mrb[0].mxu0
    %v830 = vadd.f32 %v729, %v829
    %v831 = vpop.f32.mrb[0].mxu0
    %v832 = vpop.f32.mrb[0].mxu0
    %v833 = vadd.f32 %v729, %v832
    %v834 = vpop.f32.mrb[0].mxu0
    %835 = vmatprep.mubr.bf16.mxu0 0
    %836 = vmatmul.mubr.bf16.gmra.mrb[0].mxu0 %v695
    %v837 = vpop.f32.mrb[0].mxu0
    %v838 = vadd.f32 %v729, %v837
    %v839 = vpop.f32.mrb[0].mxu0
    %v840 = vpop.f32.mrb[0].mxu0
    %v841 = vadd.f32 %v729, %v840
    %v842 = vpop.f32.mrb[0].mxu0
    %843 = vmatprep.mubr.bf16.mxu0 0
    %844 = vmatmul.mubr.bf16.gmra.mrb[0].mxu0 %v696
    %v845 = vpop.f32.mrb[0].mxu0
    %v846 = vadd.f32 %v729, %v845
    %v847 = vpop.f32.mrb[0].mxu0
    %v848 = vpop.f32.mrb[0].mxu0
    %v849 = vadd.f32 %v729, %v848
    %v850 = vpop.f32.mrb[0].mxu0
    %851 = vmatprep.mubr.bf16.mxu0 0
    %852 = vmatmul.mubr.bf16.gmra.mrb[0].mxu0 %v697
    %v853 = vpop.f32.mrb[0].mxu0
    %v854 = vadd.f32 %v729, %v853
    %v855 = vpop.f32.mrb[0].mxu0
    %v856 = vpop.f32.mrb[0].mxu0
    %v857 = vadd.f32 %v729, %v856
    %v858 = vpop.f32.mrb[0].mxu0
    %859 = vmatprep.mubr.bf16.mxu0 0
    %860 = vmatmul.mubr.bf16.gmra.mrb[0].mxu0 %v698
    %v861 = vpop.f32.mrb[0].mxu0
    %v862 = vadd.f32 %v729, %v861
    %v863 = vpop.f32.mrb[0].mxu0
    %v864 = vpop.f32.mrb[0].mxu0
    %v865 = vadd.f32 %v729, %v864
    %v866 = vpop.f32.mrb[0].mxu0
    %867 = vmatprep.mubr.bf16.mxu0 0
    %868 = vmatmul.mubr.bf16.gmra.mrb[0].mxu0 %v699
    %v869 = vpop.f32.mrb[0].mxu0
    %v870 = vadd.f32 %v729, %v869
    %v871 = vpop.f32.mrb[0].mxu0
    %v872 = vpop.f32.mrb[0].mxu0
    %v873 = vadd.f32 %v729, %v872
    %v874 = vpop.f32.mrb[0].mxu0
    %875 = vmatprep.mubr.bf16.mxu0 0
    %876 = vmatmul.mubr.bf16.gmra.mrb[0].mxu0 %v700
    %v877 = vpop.f32.mrb[0].mxu0
    %v878 = vadd.f32 %v729, %v877
    %v879 = vpop.f32.mrb[0].mxu0
    %v880 = vpop.f32.mrb[0].mxu0
    %v881 = vadd.f32 %v729, %v880
    %v882 = vpop.f32.mrb[0].mxu0
    %883 = vmatprep.mubr.bf16.mxu0 0
    %884 = vmatmul.mubr.bf16.gmra.mrb[0].mxu0 %v701
    %v885 = vpop.f32.mrb[0].mxu0
    %v886 = vadd.f32 %v729, %v885
    %v887 = vpop.f32.mrb[0].mxu0
    %v888 = vpop.f32.mrb[0].mxu0
    %v889 = vadd.f32 %v729, %v888
    %v890 = vpop.f32.mrb[0].mxu0
    %891 = vmatprep.mubr.bf16.mxu0 0
    %892 = vmatmul.mubr.bf16.gmra.mrb[0].mxu0 %v702
    %v893 = vpop.f32.mrb[0].mxu0
    %v894 = vadd.f32 %v729, %v893
    %v895 = vpop.f32.mrb[0].mxu0
    %v896 = vpop.f32.mrb[0].mxu0
    %v897 = vadd.f32 %v729, %v896
    %v898 = vpop.f32.mrb[0].mxu0
    %899 = vmatprep.mubr.bf16.mxu0 0
    %900 = vmatmul.mubr.bf16.gmra.mrb[0].mxu0 %v703
    %v901 = vpop.f32.mrb[0].mxu0
    %v902 = vadd.f32 %v729, %v901
    %v903 = vpop.f32.mrb[0].mxu0
    %v904 = vpop.f32.mrb[0].mxu0
    %v905 = vadd.f32 %v729, %v904
    %v906 = vpop.f32.mrb[0].mxu0
    %907 = vmatprep.mubr.bf16.mxu0 0
    %908 = vmatmul.mubr.bf16.gmra.mrb[0].mxu0 %v704
    %v909 = vpop.f32.mrb[0].mxu0
    %v910 = vadd.f32 %v729, %v909
    %v911 = vpop.f32.mrb[0].mxu0
    %v912 = vpop.f32.mrb[0].mxu0
    %v913 = vadd.f32 %v729, %v912
    %v914 = vpop.f32.mrb[0].mxu0
    %915 = vmatprep.mubr.bf16.mxu0 0
    %916 = vmatmul.mubr.bf16.gmra.mrb[0].mxu0 %v705
    %v917 = vpop.f32.mrb[0].mxu0
    %v918 = vadd.f32 %v729, %v917
    %v919 = vpop.f32.mrb[0].mxu0
    %v920 = vpop.f32.mrb[0].mxu0
    %v921 = vadd.f32 %v729, %v920
    %v922 = vpop.f32.mrb[0].mxu0
    %923 = vmatprep.mubr.bf16.mxu0 0
    %924 = vmatmul.mubr.bf16.gmra.mrb[0].mxu0 %v706
    %v925 = vpop.f32.mrb[0].mxu0
    %v926 = vadd.f32 %v729, %v925
    %v927 = vpop.f32.mrb[0].mxu0
    %v928 = vpop.f32.mrb[0].mxu0
    %v929 = vadd.f32 %v729, %v928
    %v930 = vpop.f32.mrb[0].mxu0
    %931 = vmatprep.mubr.bf16.mxu0 0
    %932 = vmatmul.mubr.bf16.gmra.mrb[0].mxu0 %v707
    %v933 = vpop.f32.mrb[0].mxu0
    %v934 = vadd.f32 %v729, %v933
    %v935 = vpop.f32.mrb[0].mxu0
    %v936 = vpop.f32.mrb[0].mxu0
    %v937 = vadd.f32 %v729, %v936
    %v938 = vpop.f32.mrb[0].mxu0
    %939 = vdwg.mxu0
    %v940 = vmax.f32 %v814, 0.0
    %v941 = vmax.f32 %v817, 0.0
    %v942 = vmax.f32 %v822, 0.0
    %v943 = vmax.f32 %v825, 0.0
    %v944 = vmax.f32 %v830, 0.0
    %v945 = vmax.f32 %v833, 0.0
    %v946 = vmax.f32 %v838, 0.0
    %v947 = vmax.f32 %v841, 0.0
    %v948 = vmax.f32 %v846, 0.0
    %v949 = vmax.f32 %v849, 0.0
    %v950 = vmax.f32 %v854, 0.0
    %v951 = vmax.f32 %v857, 0.0
    %v952 = vmax.f32 %v862, 0.0
    %v953 = vmax.f32 %v865, 0.0
    %v954 = vmax.f32 %v870, 0.0
    %v955 = vmax.f32 %v873, 0.0
    %v956 = vmax.f32 %v878, 0.0
    %v957 = vmax.f32 %v881, 0.0
    %v958 = vmax.f32 %v886, 0.0
    %v959 = vmax.f32 %v889, 0.0
    %v960 = vmax.f32 %v894, 0.0
    %v961 = vmax.f32 %v897, 0.0
    %v962 = vmax.f32 %v902, 0.0
    %v963 = vmax.f32 %v905, 0.0
    %v964 = vmax.f32 %v910, 0.0
    %v965 = vmax.f32 %v913, 0.0
    %v966 = vmax.f32 %v918, 0.0
    %v967 = vmax.f32 %v921, 0.0
    %v968 = vmax.f32 %v926, 0.0
    %v969 = vmax.f32 %v929, 0.0
    %v970 = vmax.f32 %v934, 0.0
    %v971 = vmax.f32 %v937, 0.0
    %v972 = vld [vmem:[%s7] sm:$0x1]
    %v973 = vpack.c.bf16 %v941, %v940
    %v974 = vpack.c.bf16 %v943, %v942
    %v975 = vpack.c.bf16 %v945, %v944
    %v976 = vpack.c.bf16 %v947, %v946
    %v977 = vpack.c.bf16 %v949, %v948
    %v978 = vpack.c.bf16 %v951, %v950
    %v979 = vpack.c.bf16 %v953, %v952
    %v980 = vpack.c.bf16 %v955, %v954
    %v981 = vpack.c.bf16 %v957, %v956
    %v982 = vpack.c.bf16 %v959, %v958
    %v983 = vpack.c.bf16 %v961, %v960
    %v984 = vpack.c.bf16 %v963, %v962
    %v985 = vpack.c.bf16 %v965, %v964
    %v986 = vpack.c.bf16 %v967, %v966
    %v987 = vpack.c.bf16 %v969, %v968
    %v988 = vpack.c.bf16 %v971, %v970
    %s989 = sld [smem:[#allocation2]]
    %v990 = vstv %s989
    %991 = vmatprep.subr.bf16.mxu0 0
    %992 = vmatpush1.bf16.xpose.msra.mxu0 %v973
    %993 = vmatprep.subr.bf16.mxu0 0
    %994 = vmatpush1.bf16.xpose.msra.mxu0 %v974
    %995 = vmatprep.subr.bf16.mxu0 0
    %996 = vmatpush1.bf16.xpose.msra.mxu0 %v975
    %997 = vmatprep.subr.bf16.mxu0 0
    %998 = vmatpush1.bf16.xpose.msra.mxu0 %v976
    %999 = vmatprep.subr.bf16.mxu0 0
    %1000 = vmatpush1.bf16.xpose.msra.mxu0 %v977
    %1001 = vmatprep.subr.bf16.mxu0 0
    %1002 = vmatpush1.bf16.xpose.msra.mxu0 %v978
    %1003 = vmatprep.subr.bf16.mxu0 0
    %1004 = vmatpush1.bf16.xpose.msra.mxu0 %v979
    %1005 = vmatprep.subr.bf16.mxu0 0
    %1006 = vmatpush1.bf16.xpose.msra.mxu0 %v980
    %1007 = vmatprep.subr.bf16.mxu0 0
    %1008 = vmatpush1.bf16.xpose.msra.mxu0 %v981
    %1009 = vmatprep.subr.bf16.mxu0 0
    %1010 = vmatpush1.bf16.xpose.msra.mxu0 %v982
    %1011 = vmatprep.subr.bf16.mxu0 0
    %1012 = vmatpush1.bf16.xpose.msra.mxu0 %v983
    %1013 = vmatprep.subr.bf16.mxu0 0
    %1014 = vmatpush1.bf16.xpose.msra.mxu0 %v984
    %1015 = vmatprep.subr.bf16.mxu0 0
    %1016 = vmatpush1.bf16.xpose.msra.mxu0 %v985
    %1017 = vmatprep.subr.bf16.mxu0 0
    %1018 = vmatpush1.bf16.xpose.msra.mxu0 %v986
    %1019 = vmatprep.subr.bf16.mxu0 0
    %1020 = vmatpush1.bf16.xpose.msra.mxu0 %v987
    %1021 = vmatprep.subr.bf16.mxu0 0
    %1022 = vmatpush1.bf16.xpose.msra.mxu0 %v988
    %1023 = vmatprep.mubr.bf16.mxu0 0
    %1024 = vmatmul.mubr.bf16.gmra.mrb[0].mxu0 %v972
    %v1025 = vpop.f32.mrb[0].mxu0
    %v1026 = vadd.f32 %v990, %v1025
    %v1027 = vpop.f32.mrb[0].mxu0
    %v1028 = vadd.f32 %v990, %v1027
    %v1029 = vpop.f32.mrb[0].mxu0
    %v1030 = vpop.f32.mrb[0].mxu0
    %1031 = vdwg.mxu0
    %v1032 = vxor.u32 %v1026, 2147483648
    %v1033 = vxor.u32 %v1028, 2147483648
    %v1034 = vmul.f32 %v1032, 1.442695
    %v1035 = vpow.pop %v1034
    %v1036 = vmul.f32 %v1033, 1.442695
    %v1037 = vpow.pop %v1036
    %v1038 = vadd.f32 %v1035, 1.0
    %v1039 = vadd.f32 %v1037, 1.0
    %v1040 = vrcp.pop %v1038
    %v1041 = vmul.f32 1.0, %v1040
    %v1042 = vrcp.pop %v1039
    %v1043 = vmul.f32 1.0, %v1042
    %v1046 = vcombine.low %v1041, %v1043
    %v1048 = vunpack.c.l.s4 1966171168
    %v1049 = vunpack.c.0.s8 %v1048
    %v1050 = vlaneseq
    %v1051 = vshrl.u32 %v1050, 7
    %v1052 = vsub.s32 %v1049, %v1051
    %v1053 = vrot.slane %v1046, %v1052
    %v1055 = vunpack.c.l.s4 1966171168
    %v1056 = vunpack.c.0.s8 %v1055
    %v1057 = vlaneseq
    %v1058 = vshrl.u32 %v1057, 7
    %v1059 = vsub.s32 %v1056, %v1058
    %v1060 = vrot.slane %v1053, %v1059
    %v1062 = vlaneseq
    %vm1063 = vcmp.ge.s32.totalorder %v1062, 0
    %vm1064 = vcmp.lt.s32.totalorder %v1062, 256
    %vm1065 = vmand %vm1063, %vm1064
    %1066 = vst.msk [vmem:[#allocation3] sm:$0x3] %vm1065, %v1060
    // Predicated region
    $region38: #{tpu_custom_call.1} parent=1 // pred_check
      _
    $region39: #{tpu_custom_call.1} parent=1 // pred_check_branch
      %1068 = sbr.rel (0) target = $region41
    $region40: #{tpu_custom_call.1} parent=1 // pred_region
      %s1070 = ssub.s32 32, 32
      %1071 = vsyncadd [#allocation4], %s1070
      %s1073 = sshll.u32 [#allocation3], 4
      %s1074 = int_to_ptr.vmem [resolvable:$true] %s1073
      %1076 = dma.vmem_to_hbm [thread:$0]  %s1074, 32, %s9, [#allocation4]
    $region41: #{tpu_custom_call.1} parent=1 // pred_fallthru
      _
    // Predicated region
    $region42: #{tpu_custom_call.1} parent=1 // pred_check
      _
    $region43: #{tpu_custom_call.1} parent=1 // pred_check_branch
      %1078 = sbr.rel (0) target = $region45
    $region44: #{tpu_custom_call.1} parent=1 // pred_region
      %1079 = dma.done [#allocation4], 32
    $region45: #{tpu_custom_call.1} parent=1 // pred_fallthru
      _
    %1080 = vsyncpa [#allocation4], 1

</llo_original>
